<compile_context>
chip_gen: v7x
topology: tpu7x:2x2x1
jax: 0.10.0
libtpu: 0.0.40
codegen_flags: <defaults>
</compile_context>

<pallas_src>
import jax
import jax.numpy as jnp
from jax.experimental import pallas as pl
from jax.experimental.pallas import tpu as pltpu


# -----------------------------------------------------------------------------
# Pallas kernel: upsample + conv + BN-stat partials, fully fused
# -----------------------------------------------------------------------------
def _fused_upsample_conv_kernel(x_ref, ah_ref, g_ref, out_ref, stats_ref, t_ref):
    # x_ref    : (1, H, C_in*W)         bf16  image, channels folded into lanes
    # ah_ref   : (KH, OH, H)            bf16  per-kh (upsample+pad) row operators
    # g_ref    : (KH*C_in*W, C_out*OW)  bf16  conv weight folded with col operators
    # out_ref  : (1, OH, C_out*OW)      f32   conv output, lane-dense (co-major, ow-minor)
    # stats_ref: (1, 2, C_out*OW)       f32   row 0: sum over OH, row 1: sum of squares
    # t_ref    : (OH, KH*C_in*W)        bf16  VMEM scratch (stage-1 output, kh in K dim)
    KH, OH, _ = ah_ref.shape
    CW = x_ref.shape[2]

    x = x_ref[0]                                                     # (H, CW) bf16

    # Stage 1: H-axis interpolation.  One small GEMM per kh tap, written directly into
    # the (OH, KH*CW) layout so kh lands in the contraction dim of stage 2.
    for kh in range(KH):                                             # static unroll
        t_kh = jnp.dot(ah_ref[kh], x, preferred_element_type=jnp.float32)   # (OH, CW)
        t_ref[:, kh * CW:(kh + 1) * CW] = t_kh.astype(jnp.bfloat16)

    # Stage 2: single GEMM, K = KH*CW (256 at demo size), f32 accumulation on the MXU.
    acc = jnp.dot(t_ref[...], g_ref[...], preferred_element_type=jnp.float32)  # (OH, COW)

    out_ref[0] = acc
    # Fused BatchNorm batch-stat partials (reduced over OH; host finishes over N and OW),
    # packed into a single small output.
    s1 = jnp.sum(acc, axis=0, keepdims=True)                         # (1, COW)
    s2 = jnp.sum(acc * acc, axis=0, keepdims=True)                   # (1, COW)
    stats_ref[0] = jnp.concatenate([s1, s2], axis=0)                 # (2, COW)


# -----------------------------------------------------------------------------
# Host-side operator construction (tiny, shape/weight-dependent constants)
# -----------------------------------------------------------------------------
def _bilinear_matrix(out_size, in_size, scale):
    """Row-interp matrix matching nn.Upsample(mode='bilinear', align_corners=False)."""
    dst = jnp.arange(out_size, dtype=jnp.float32)
    src = (dst + 0.5) / scale - 0.5
    src = jnp.maximum(src, 0.0)                      # PyTorch clamps negative source coords
    i0 = jnp.clip(jnp.floor(src).astype(jnp.int32), 0, in_size - 1)
    i1 = jnp.minimum(i0 + 1, in_size - 1)
    w1 = src - i0.astype(jnp.float32)
    w0 = 1.0 - w1
    m = jnp.zeros((out_size, in_size), jnp.float32)
    m = m.at[jnp.arange(out_size), i0].add(w0)
    m = m.at[jnp.arange(out_size), i1].add(w1)
    return m


def _conv_tap_operators(up_size, in_size, scale, K, S, P):
    """taps[k][o, i] = row (S*o + k) of zero-padded Upsample matrix (fuses upsample + pad)."""
    up = _bilinear_matrix(up_size, in_size, scale)                  # (up, in)
    up_pad = jnp.pad(up, ((P, P), (0, 0)))                          # zero rows == conv padding
    out_size = (up_size + 2 * P - K) // S + 1
    rows = jnp.arange(out_size) * S
    taps = jnp.stack([up_pad[rows + k] for k in range(K)], axis=0)  # (K, out, in)
    return taps, out_size


# -----------------------------------------------------------------------------
# Forward pass
# -----------------------------------------------------------------------------
@jax.jit
def conv_upsample_forward(x, conv_w, bn_gamma, bn_beta, eps=1e-5):
    N, C_in, H, W = x.shape
    C_out, _, KH, KW = conv_w.shape
    scale, S, P = 4, 2, 1

    Ah, OH = _conv_tap_operators(H * scale, H, scale, KH, S, P)     # (KH, OH, H)
    Aw, OW = _conv_tap_operators(W * scale, W, scale, KW, S, P)     # (KW, OW, W)
    CW, COW = C_in * W, C_out * OW

    # Combined per-kh GEMM weight, flattened so the contraction index is (kh, ci, w):
    #   G[kh*CW + ci*W + w, co*OW + ow] = sum_kw conv_w[co,ci,kh,kw] * Aw[kw,ow,w]
    G = jnp.einsum('ocab,bqw->acwoq', conv_w.astype(jnp.float32), Aw)
    G = G.reshape(KH * CW, COW).astype(jnp.bfloat16)
    AH = Ah.astype(jnp.bfloat16)                                    # bilinear k/8 weights: exact
    # Fold channels into the lane axis: x_t[n, h, ci*W + w] = x[n, ci, h, w]  (tiny tensor).
    x_t = x.astype(jnp.float32).transpose(0, 2, 1, 3).reshape(N, H, CW).astype(jnp.bfloat16)

    # ---- fused upsample + conv + BN-stat accumulation (single Pallas kernel, grid over N) ----
    conv_out, stats = pl.pallas_call(
        _fused_upsample_conv_kernel,
        out_shape=(
            jax.ShapeDtypeStruct((N, OH, COW), jnp.float32),
            jax.ShapeDtypeStruct((N, 2, COW), jnp.float32),
        ),
        grid=(N,),
        in_specs=[
            pl.BlockSpec((1, H, CW), lambda n: (n, 0, 0)),
            pl.BlockSpec((KH, OH, H), lambda n: (0, 0, 0)),
            pl.BlockSpec((KH * CW, COW), lambda n: (0, 0)),
        ],
        out_specs=(
            pl.BlockSpec((1, OH, COW), lambda n: (n, 0, 0)),
            pl.BlockSpec((1, 2, COW), lambda n: (n, 0, 0)),
        ),
        scratch_shapes=[pltpu.VMEM((OH, KH * CW), jnp.bfloat16)],
        compiler_params=pltpu.CompilerParams(dimension_semantics=("parallel",)),
    )(x_t, AH, G)

    # ---- finalize BatchNorm batch statistics (tiny reductions, f32) ----
    cnt = jnp.float32(N * OH * OW)
    s1_c = stats[:, 0, :].reshape(N, C_out, OW).sum(axis=(0, 2))
    s2_c = stats[:, 1, :].reshape(N, C_out, OW).sum(axis=(0, 2))
    mean = s1_c / cnt
    # TODO(synk): E[x^2]-E[x]^2 in f32 can cancel badly if |mean| >> std at larger sizes;
    #             switch to a shifted / Welford finalize if that regime is reached.
    var = jnp.maximum(s2_c / cnt - mean * mean, 0.0)                 # biased, as PyTorch normalization
    scl = bn_gamma.astype(jnp.float32) * jax.lax.rsqrt(var + eps)
    shf = bn_beta.astype(jnp.float32) - mean * scl
    # TODO(synk): BatchNorm running_mean/running_var buffers are not updated (forward output only).

    # ---- BN + ReLU epilogue in plain jnp (f32), fused by XLA with the relayout to NCHW ----
    y = conv_out.reshape(N, OH, C_out, OW)
    y = jnp.maximum(y * scl.reshape(1, 1, C_out, 1) + shf.reshape(1, 1, C_out, 1), 0.0)
    # TODO(synk): for production, return NHWC (or fold into the consumer) to skip this transpose.
    return y.transpose(0, 2, 1, 3)                                   # NCHW


# -----------------------------------------------------------------------------
# Plain-JAX reference (same bilinear matrices + XLA conv) used only for self-check.
# Note: shares _bilinear_matrix with the kernel path, so the clamp-at-zero behavior
# itself is not independently validated against PyTorch here.
# -----------------------------------------------------------------------------
def _reference_forward(x, conv_w, bn_gamma, bn_beta, eps=1e-5):
    N, C_in, H, W = x.shape
    Wh = _bilinear_matrix(4 * H, H, 4)
    Ww = _bilinear_matrix(4 * W, W, 4)
    x_up = jnp.einsum('ph,nchw,qw->ncpq', Wh, x.astype(jnp.float32), Ww)
    y = jax.lax.conv_general_dilated(
        x_up, conv_w.astype(jnp.float32), window_strides=(2, 2),
        padding=((1, 1), (1, 1)), dimension_numbers=('NCHW', 'OIHW', 'NCHW'))
    mean = y.mean(axis=(0, 2, 3), keepdims=True)
    var = ((y - mean) ** 2).mean(axis=(0, 2, 3), keepdims=True)
    yn = (y - mean) / jnp.sqrt(var + eps)
    yn = yn * bn_gamma.reshape(1, -1, 1, 1) + bn_beta.reshape(1, -1, 1, 1)
    return jnp.maximum(yn, 0.0)


# -----------------------------------------------------------------------------
if __name__ == "__main__":
    key = jax.random.PRNGKey(0)
    k_x, k_w = jax.random.split(key)

    N, C_in, H, W = 2, 4, 16, 16
    C_out = 8

    x = jax.random.normal(k_x, (N, C_in, H, W), dtype=jnp.float32)
    # PyTorch defaults: conv has no bias, BN gamma=1, beta=0.
    conv_w = 0.1 * jax.random.normal(k_w, (C_out, C_in, 4, 4), dtype=jnp.float32)
    bn_gamma = jnp.ones((C_out,), jnp.float32)
    bn_beta = jnp.zeros((C_out,), jnp.float32)

    out = jax.block_until_ready(conv_upsample_forward(x, conv_w, bn_gamma, bn_beta))

    # upsample 16 -> 64, conv k4 s2 p1 -> 32
    assert out.shape == (N, C_out, 4 * H // 2, 4 * W // 2), out.shape
    assert bool(jnp.all(out >= 0.0))                     # ReLU

    ref = jax.block_until_ready(_reference_forward(x, conv_w, bn_gamma, bn_beta))
    max_err = float(jnp.max(jnp.abs(out - ref)))
    # bf16 GEMM operands (f32 accumulate) vs f32 reference on BN-normalized (~unit-scale)
    # outputs: expected max abs error ~1e-2; 5e-2 leaves margin.
    assert max_err < 5e-2, f"mismatch vs reference: {max_err}"

    print("KERNEL_OK")
</pallas_src>

<mosaic_0001>
module attributes {stable_mosaic.version = 11 : i64} {
  func.func private @main(%arg0: i32) attributes {dimension_semantics = [#tpu.dimension_semantics<core_parallel>], iteration_bounds = array<i64: 2>, tpu.core_type = #tpu.core_type<sc_scalar_subcore>, window_params = []} {
    return
  }
}

module attributes {stable_mosaic.version = 11 : i64} {
  func.func private @main(%arg0: i32) attributes {dimension_semantics = [#tpu.dimension_semantics<core_parallel>], iteration_bounds = array<i64: 2>, tpu.core_type = #tpu.core_type<sc_scalar_subcore>, window_params = []} {
    return
  }
}

module attributes {stable_mosaic.version = 11 : i64} {
  func.func @_fused_upsample_conv_kernel(%arg0: i32, %arg1: memref<1x16x64xbf16, #tpu.memory_space<vmem>>, %arg2: memref<4x32x16xbf16, #tpu.memory_space<vmem>>, %arg3: memref<256x256xbf16, #tpu.memory_space<vmem>>, %arg4: memref<1x32x256xf32, #tpu.memory_space<vmem>>, %arg5: memref<1x2x256xf32, #tpu.memory_space<vmem>>, %arg6: memref<32x256xbf16, #tpu.memory_space<vmem>>) attributes {dimension_semantics = [#tpu.dimension_semantics<parallel>], iteration_bounds = array<i64: 2>, scalar_prefetch = 0 : i64, scratch_operands = 1 : i64, tpu.core_type = #tpu.core_type<tc>, window_params = [{transform_indices = @transform_0, window_bounds = array<i64: 1, 16, 64>}, {pipeline_mode = #tpu.pipeline_mode<synchronous>, transform_indices = @transform_1, window_bounds = array<i64: 4, 32, 16>}, {pipeline_mode = #tpu.pipeline_mode<synchronous>, transform_indices = @transform_2, window_bounds = array<i64: 256, 256>}, {transform_indices = @transform_3, window_bounds = array<i64: 1, 32, 256>}, {transform_indices = @transform_4, window_bounds = array<i64: 1, 2, 256>}]} {
    %c0 = arith.constant 0 : index
    %c0_0 = arith.constant 0 : index
    %c0_1 = arith.constant 0 : index
    %0 = vector.load %arg1[%c0, %c0_0, %c0_1] : memref<1x16x64xbf16, #tpu.memory_space<vmem>>, vector<1x16x64xbf16>
    %1 = vector.shape_cast %0 : vector<1x16x64xbf16> to vector<16x64xbf16>
    %c0_2 = arith.constant 0 : index
    %c0_3 = arith.constant 0 : index
    %c0_4 = arith.constant 0 : index
    %2 = vector.load %arg2[%c0_2, %c0_3, %c0_4] : memref<4x32x16xbf16, #tpu.memory_space<vmem>>, vector<1x32x16xbf16>
    %3 = vector.shape_cast %2 : vector<1x32x16xbf16> to vector<32x16xbf16>
    %cst = arith.constant dense<0.000000e+00> : vector<32x64xf32>
    %4 = tpu.matmul %3, %1, %cst {dimension_numbers = #tpu.dot_dimension_numbers<[1], [0], [0], [1], [0, 0, 1, 1], [], []>} : vector<32x16xbf16>, vector<16x64xbf16>, vector<32x64xf32> -> vector<32x64xf32>
    %5 = arith.truncf %4 : vector<32x64xf32> to vector<32x64xbf16>
    %c0_5 = arith.constant 0 : index
    %c0_6 = arith.constant 0 : index
    %6 = vector.load %arg6[%c0_5, %c0_6] : memref<32x256xbf16, #tpu.memory_space<vmem>>, vector<32x64xbf16>
    tpu.vector_store %arg6[%c0_5, %c0_6], %5 {strides = array<i32>} : memref<32x256xbf16, #tpu.memory_space<vmem>>, vector<32x64xbf16>,
    %c1 = arith.constant 1 : index
    %c0_7 = arith.constant 0 : index
    %c0_8 = arith.constant 0 : index
    %7 = vector.load %arg2[%c1, %c0_7, %c0_8] : memref<4x32x16xbf16, #tpu.memory_space<vmem>>, vector<1x32x16xbf16>
    %8 = vector.shape_cast %7 : vector<1x32x16xbf16> to vector<32x16xbf16>
    %cst_9 = arith.constant dense<0.000000e+00> : vector<32x64xf32>
    %9 = tpu.matmul %8, %1, %cst_9 {dimension_numbers = #tpu.dot_dimension_numbers<[1], [0], [0], [1], [0, 0, 1, 1], [], []>} : vector<32x16xbf16>, vector<16x64xbf16>, vector<32x64xf32> -> vector<32x64xf32>
    %10 = arith.truncf %9 : vector<32x64xf32> to vector<32x64xbf16>
    %c0_10 = arith.constant 0 : index
    %c64 = arith.constant 64 : index
    %11 = vector.load %arg6[%c0_10, %c64] : memref<32x256xbf16, #tpu.memory_space<vmem>>, vector<32x64xbf16>
    tpu.vector_store %arg6[%c0_10, %c64], %10 {strides = array<i32>} : memref<32x256xbf16, #tpu.memory_space<vmem>>, vector<32x64xbf16>,
    %c2 = arith.constant 2 : index
    %c0_11 = arith.constant 0 : index
    %c0_12 = arith.constant 0 : index
    %12 = vector.load %arg2[%c2, %c0_11, %c0_12] : memref<4x32x16xbf16, #tpu.memory_space<vmem>>, vector<1x32x16xbf16>
    %13 = vector.shape_cast %12 : vector<1x32x16xbf16> to vector<32x16xbf16>
    %cst_13 = arith.constant dense<0.000000e+00> : vector<32x64xf32>
    %14 = tpu.matmul %13, %1, %cst_13 {dimension_numbers = #tpu.dot_dimension_numbers<[1], [0], [0], [1], [0, 0, 1, 1], [], []>} : vector<32x16xbf16>, vector<16x64xbf16>, vector<32x64xf32> -> vector<32x64xf32>
    %15 = arith.truncf %14 : vector<32x64xf32> to vector<32x64xbf16>
    %c0_14 = arith.constant 0 : index
    %c128 = arith.constant 128 : index
    %16 = vector.load %arg6[%c0_14, %c128] : memref<32x256xbf16, #tpu.memory_space<vmem>>, vector<32x64xbf16>
    tpu.vector_store %arg6[%c0_14, %c128], %15 {strides = array<i32>} : memref<32x256xbf16, #tpu.memory_space<vmem>>, vector<32x64xbf16>,
    %c3 = arith.constant 3 : index
    %c0_15 = arith.constant 0 : index
    %c0_16 = arith.constant 0 : index
    %17 = vector.load %arg2[%c3, %c0_15, %c0_16] : memref<4x32x16xbf16, #tpu.memory_space<vmem>>, vector<1x32x16xbf16>
    %18 = vector.shape_cast %17 : vector<1x32x16xbf16> to vector<32x16xbf16>
    %cst_17 = arith.constant dense<0.000000e+00> : vector<32x64xf32>
    %19 = tpu.matmul %18, %1, %cst_17 {dimension_numbers = #tpu.dot_dimension_numbers<[1], [0], [0], [1], [0, 0, 1, 1], [], []>} : vector<32x16xbf16>, vector<16x64xbf16>, vector<32x64xf32> -> vector<32x64xf32>
    %20 = arith.truncf %19 : vector<32x64xf32> to vector<32x64xbf16>
    %c0_18 = arith.constant 0 : index
    %c192 = arith.constant 192 : index
    %21 = vector.load %arg6[%c0_18, %c192] : memref<32x256xbf16, #tpu.memory_space<vmem>>, vector<32x64xbf16>
    tpu.vector_store %arg6[%c0_18, %c192], %20 {strides = array<i32>} : memref<32x256xbf16, #tpu.memory_space<vmem>>, vector<32x64xbf16>,
    %c0_19 = arith.constant 0 : index
    %c0_20 = arith.constant 0 : index
    %22 = vector.load %arg6[%c0_19, %c0_20] : memref<32x256xbf16, #tpu.memory_space<vmem>>, vector<32x256xbf16>
    %c0_21 = arith.constant 0 : index
    %c0_22 = arith.constant 0 : index
    %23 = vector.load %arg3[%c0_21, %c0_22] : memref<256x256xbf16, #tpu.memory_space<vmem>>, vector<256x256xbf16>
    %cst_23 = arith.constant dense<0.000000e+00> : vector<32x256xf32>
    %24 = tpu.matmul %22, %23, %cst_23 {dimension_numbers = #tpu.dot_dimension_numbers<[1], [0], [0], [1], [0, 0, 1, 1], [], []>} : vector<32x256xbf16>, vector<256x256xbf16>, vector<32x256xf32> -> vector<32x256xf32>
    %c0_24 = arith.constant 0 : index
    %c0_25 = arith.constant 0 : index
    %c0_26 = arith.constant 0 : index
    %25 = vector.load %arg4[%c0_24, %c0_25, %c0_26] : memref<1x32x256xf32, #tpu.memory_space<vmem>>, vector<1x32x256xf32>
    %26 = vector.shape_cast %25 : vector<1x32x256xf32> to vector<32x256xf32>
    %27 = vector.shape_cast %24 : vector<32x256xf32> to vector<1x32x256xf32>
    tpu.vector_store %arg4[%c0_24, %c0_25, %c0_26], %27 {strides = array<i32>} : memref<1x32x256xf32, #tpu.memory_space<vmem>>, vector<1x32x256xf32>,
    %cst_27 = arith.constant dense<0.000000e+00> : vector<256xf32>
    %28 = vector.multi_reduction <add>, %24, %cst_27 [0] : vector<32x256xf32> to vector<256xf32>
    %29 = vector.shape_cast %28 : vector<256xf32> to vector<1x256xf32>
    %30 = arith.mulf %24, %24 : vector<32x256xf32>
    %cst_28 = arith.constant dense<0.000000e+00> : vector<256xf32>
    %31 = vector.multi_reduction <add>, %30, %cst_28 [0] : vector<32x256xf32> to vector<256xf32>
    %32 = vector.shape_cast %31 : vector<256xf32> to vector<1x256xf32>
    %33 = tpu.concatenate %29, %32 in 0 : vector<1x256xf32>, vector<1x256xf32> -> vector<2x256xf32>
    %c0_29 = arith.constant 0 : index
    %c0_30 = arith.constant 0 : index
    %c0_31 = arith.constant 0 : index
    %34 = vector.load %arg5[%c0_29, %c0_30, %c0_31] : memref<1x2x256xf32, #tpu.memory_space<vmem>>, vector<1x2x256xf32>
    %35 = vector.shape_cast %34 : vector<1x2x256xf32> to vector<2x256xf32>
    %36 = vector.shape_cast %33 : vector<2x256xf32> to vector<1x2x256xf32>
    tpu.vector_store %arg5[%c0_29, %c0_30, %c0_31], %36 {strides = array<i32>} : memref<1x2x256xf32, #tpu.memory_space<vmem>>, vector<1x2x256xf32>,
    return
  }
  func.func @transform_0(%arg0: i32) -> (i32, i32, i32) {
    %c0_i32 = arith.constant 0 : i32
    %c0_i32_0 = arith.constant 0 : i32
    %c0_i32_1 = arith.constant 0 : i32
    return %arg0, %c0_i32, %c0_i32_0 : i32, i32, i32
  }
  func.func @transform_1(%arg0: i32) -> (i32, i32, i32) {
    %c0_i32 = arith.constant 0 : i32
    %c0_i32_0 = arith.constant 0 : i32
    %c0_i32_1 = arith.constant 0 : i32
    %c0_i32_2 = arith.constant 0 : i32
    return %c0_i32, %c0_i32_0, %c0_i32_1 : i32, i32, i32
  }
  func.func @transform_2(%arg0: i32) -> (i32, i32) {
    %c0_i32 = arith.constant 0 : i32
    %c0_i32_0 = arith.constant 0 : i32
    %c0_i32_1 = arith.constant 0 : i32
    return %c0_i32, %c0_i32_0 : i32, i32
  }
  func.func @transform_3(%arg0: i32) -> (i32, i32, i32) {
    %c0_i32 = arith.constant 0 : i32
    %c0_i32_0 = arith.constant 0 : i32
    %c0_i32_1 = arith.constant 0 : i32
    return %arg0, %c0_i32, %c0_i32_0 : i32, i32, i32
  }
  func.func @transform_4(%arg0: i32) -> (i32, i32, i32) {
    %c0_i32 = arith.constant 0 : i32
    %c0_i32_0 = arith.constant 0 : i32
    %c0_i32_1 = arith.constant 0 : i32
    return %arg0, %c0_i32, %c0_i32_0 : i32, i32, i32
  }
}

</mosaic_0001>

<llo_original>
// kernel: conv_upsample_forward.1
$region0: #{conv_upsample_forward.1}
  #allocation0 [shape = 'u32[]', space=smem, size = 0x4, offset = 0x4, fixed_abs, tag = 'smem constant byte address 0x4 - core index']
  #allocation1 [shape = 'u32[144,128]{1,0:T(1,128)}', space=vmem, size = 0x12000, scoped, tag = 'internal scratch']
  #allocation2 [shape = 'bf16[32,256]{1,0:T(16,128)(2,1)}', space=vmem, size = 0x4000, scoped, tag = 'scratch operand']
  %s0 = inlined_call_operand.vmem [shape: bf16[2,16,64], index: 0, kind: input, shape index: {}]
  %s1 = inlined_call_operand.vmem [shape: bf16[4,32,16], index: 1, kind: input, shape index: {}]
  %s2 = inlined_call_operand.vmem [shape: bf16[256,256], index: 2, kind: input, shape index: {}]
  %s3 = inlined_call_operand.vmem [shape: f32[2,32,256], index: 3, kind: output, shape index: {0}]
  %s4 = inlined_call_operand.vmem [shape: f32[2,2,256], index: 4, kind: output, shape index: {1}]
  %5 = xla_tuple %s3, %s4
  %s6 = sld [smem:[#allocation0]]
  $region53: #{conv_upsample_forward.1} parent=0
    _
  %s8 = ssub.s32 1, %s6
  %s9 = scalar_select 0, %s8, %s6
  loop: start=0, step=1, limit=4
  $region2: #{conv_upsample_forward.1} parent=0 // loop_pre_header
    _
  $region3: #{conv_upsample_forward.1} parent=0 // loop_header
    %s11 = sphi 0, %s15
    %p12 = scmp.ge.s32.totalorder %s11, 4
    %s21 = sphi 0, %s23
    %s24 = sphi 0, %s21
    %s25 = sphi 0, %s24
    %s41 = sphi 0, %s25
    %s45 = sphi 0, %s45
    %s47 = sphi 0, %s45
    %s48 = sphi 0, %s47
    %s62 = sphi 0, %s48
    %s66 = sphi 0, %s66
    %s68 = sphi 0, %s66
    %s69 = sphi 0, %s68
    %s83 = sphi 0, %s69
    %s89 = sphi 0, %s91
    %s92 = sphi 0, %s89
    %s93 = sphi 0, %s92
    %s109 = sphi 0, %s93
    %s115 = sphi 0, %s117
    %s118 = sphi 0, %s115
    %s119 = sphi 0, %s118
    %s135 = sphi 0, %s119
  $region4: #{conv_upsample_forward.1} parent=0 // loop_header_branch
    %14 = sbr.rel (%p12) target = $region8
  $region5: #{conv_upsample_forward.1} parent=0 // loop_body
    %s16 = ssub.s32 %s11, 1
    %s17 = ssub.s32 %s11, 2
    %s18 = sadd.s32 %s11, 1
    %s19 = ssub.s32 %s11, %s18
    %p20 = scmp.eq.s32.totalorder %s19, 0
    %s22 = sadd.s32 %s21, 1
    %s23 = scalar_select %p20, %s21, %s22
    %p26 = pneg %p20
    %p27 = scmp.eq.s32.totalorder %s11, 1
    %p28 = por %p26, %p27
    %p29 = scmp.ne.s32.totalorder %s21, %s24
    %p30 = scmp.eq.s32.totalorder %s11, 0
    %p31 = por %p29, %p30
    %p32 = scmp.ne.s32.totalorder %s21, %s24
    %p33 = scmp.eq.s32.totalorder %s16, 1
    %p34 = por %p32, %p33
    %p35 = scmp.ne.s32.totalorder %s24, %s25
    %p36 = scmp.eq.s32.totalorder %s16, 0
    %p37 = por %p35, %p36
    %p38 = scmp.ne.s32.totalorder %s24, %s25
    %p39 = scmp.eq.s32.totalorder %s17, 1
    %p40 = por %p38, %p39
    %p42 = scmp.ne.s32.totalorder %s25, %s41
    %p43 = scmp.eq.s32.totalorder %s17, 0
    %p44 = por %p42, %p43
    %s46 = sadd.s32 %s45, 1
    %p49 = scmp.eq.s32.totalorder %s11, 1
    %p50 = scmp.ne.s32.totalorder %s45, %s47
    %p51 = scmp.eq.s32.totalorder %s11, 0
    %p52 = por %p50, %p51
    %p53 = scmp.ne.s32.totalorder %s45, %s47
    %p54 = scmp.eq.s32.totalorder %s16, 1
    %p55 = por %p53, %p54
    %p56 = scmp.ne.s32.totalorder %s47, %s48
    %p57 = scmp.eq.s32.totalorder %s16, 0
    %p58 = por %p56, %p57
    %p59 = scmp.ne.s32.totalorder %s47, %s48
    %p60 = scmp.eq.s32.totalorder %s17, 1
    %p61 = por %p59, %p60
    %p63 = scmp.ne.s32.totalorder %s48, %s62
    %p64 = scmp.eq.s32.totalorder %s17, 0
    %p65 = por %p63, %p64
    %s67 = sadd.s32 %s66, 1
    %p70 = scmp.eq.s32.totalorder %s11, 1
    %p71 = scmp.ne.s32.totalorder %s66, %s68
    %p72 = scmp.eq.s32.totalorder %s11, 0
    %p73 = por %p71, %p72
    %p74 = scmp.ne.s32.totalorder %s66, %s68
    %p75 = scmp.eq.s32.totalorder %s16, 1
    %p76 = por %p74, %p75
    %p77 = scmp.ne.s32.totalorder %s68, %s69
    %p78 = scmp.eq.s32.totalorder %s16, 0
    %p79 = por %p77, %p78
    %p80 = scmp.ne.s32.totalorder %s68, %s69
    %p81 = scmp.eq.s32.totalorder %s17, 1
    %p82 = por %p80, %p81
    %p84 = scmp.ne.s32.totalorder %s69, %s83
    %p85 = scmp.eq.s32.totalorder %s17, 0
    %p86 = por %p84, %p85
    %s87 = ssub.s32 %s11, %s18
    %p88 = scmp.eq.s32.totalorder %s87, 0
    %s90 = sadd.s32 %s89, 1
    %s91 = scalar_select %p88, %s89, %s90
    %p94 = pneg %p88
    %p95 = scmp.eq.s32.totalorder %s11, 1
    %p96 = por %p94, %p95
    %p97 = scmp.ne.s32.totalorder %s89, %s92
    %p98 = scmp.eq.s32.totalorder %s11, 0
    %p99 = por %p97, %p98
    %p100 = scmp.ne.s32.totalorder %s89, %s92
    %p101 = scmp.eq.s32.totalorder %s16, 1
    %p102 = por %p100, %p101
    %p103 = scmp.ne.s32.totalorder %s92, %s93
    %p104 = scmp.eq.s32.totalorder %s16, 0
    %p105 = por %p103, %p104
    %p106 = scmp.ne.s32.totalorder %s92, %s93
    %p107 = scmp.eq.s32.totalorder %s17, 1
    %p108 = por %p106, %p107
    %p110 = scmp.ne.s32.totalorder %s93, %s109
    %p111 = scmp.eq.s32.totalorder %s17, 0
    %p112 = por %p110, %p111
    %s113 = ssub.s32 %s11, %s18
    %p114 = scmp.eq.s32.totalorder %s113, 0
    %s116 = sadd.s32 %s115, 1
    %s117 = scalar_select %p114, %s115, %s116
    %p120 = pneg %p114
    %p121 = scmp.eq.s32.totalorder %s11, 1
    %p122 = por %p120, %p121
    %p123 = scmp.ne.s32.totalorder %s115, %s118
    %p124 = scmp.eq.s32.totalorder %s11, 0
    %p125 = por %p123, %p124
    %p126 = scmp.ne.s32.totalorder %s115, %s118
    %p127 = scmp.eq.s32.totalorder %s16, 1
    %p128 = por %p126, %p127
    %p129 = scmp.ne.s32.totalorder %s118, %s119
    %p130 = scmp.eq.s32.totalorder %s16, 0
    %p131 = por %p129, %p130
    %p132 = scmp.ne.s32.totalorder %s118, %s119
    %p133 = scmp.eq.s32.totalorder %s17, 1
    %p134 = por %p132, %p133
    %p136 = scmp.ne.s32.totalorder %s119, %s135
    %p137 = scmp.eq.s32.totalorder %s17, 0
    %p138 = por %p136, %p137
    %p139 = scmp.le.s32.totalorder 1, %s11
    %p140 = scmp.lt.s32.totalorder %s11, 3
    %p141 = pnand %p139, %p140
    %p142 = pneg %p141
    // Predicated region
    $region9: #{conv_upsample_forward.1} parent=5 // pred_check
      _
    $region10: #{conv_upsample_forward.1} parent=5 // pred_check_branch
      %144 = sbr.rel (%p141) target = $region12
    $region11: #{conv_upsample_forward.1} parent=5 // pred_region
      %s145 = ssub.s32 %s11, 1
      // Predicated region
      $region13: #{conv_upsample_forward.1} parent=11 // pred_check
        %p146 = pneg %p58
      $region14: #{conv_upsample_forward.1} parent=11 // pred_check_branch
        %148 = sbr.rel (%p146) target = $region16
      $region15: #{conv_upsample_forward.1} parent=11 // pred_region
        _
      $region16: #{conv_upsample_forward.1} parent=11 // pred_fallthru
        _
      // Predicated region
      $region17: #{conv_upsample_forward.1} parent=11 // pred_check
        %p149 = pneg %p79
      $region18: #{conv_upsample_forward.1} parent=11 // pred_check_branch
        %151 = sbr.rel (%p149) target = $region20
      $region19: #{conv_upsample_forward.1} parent=11 // pred_region
        _
      $region20: #{conv_upsample_forward.1} parent=11 // pred_fallthru
        _
    $region12: #{conv_upsample_forward.1} parent=5 // pred_fallthru
      _
    %p152 = scmp.lt.s32.totalorder %s11, 2
    // Predicated region
    $region21: #{conv_upsample_forward.1} parent=5 // pred_check
      %p153 = pneg %p152
    $region22: #{conv_upsample_forward.1} parent=5 // pred_check_branch
      %155 = sbr.rel (%p153) target = $region24
    $region23: #{conv_upsample_forward.1} parent=5 // pred_region
      // Predicated region
      $region25: #{conv_upsample_forward.1} parent=23 // pred_check
        %p156 = pneg %p31
      $region26: #{conv_upsample_forward.1} parent=23 // pred_check_branch
        %158 = sbr.rel (%p156) target = $region28
      $region27: #{conv_upsample_forward.1} parent=23 // pred_region
        %p159 = scmp.lt.s32.totalorder %s11, 1
        %s160 = scalar_select %p159, %s11, 1
        %s161 = smul.addr %s160, 2
        %s162 = smul.addr %s161, 4
        %s163 = scalar_lea.vmem %s0, %s162
      $region28: #{conv_upsample_forward.1} parent=23 // pred_fallthru
        _
    $region24: #{conv_upsample_forward.1} parent=5 // pred_fallthru
      _
    %p164 = scmp.le.s32.totalorder 1, %s11
    %p165 = scmp.lt.s32.totalorder %s11, 3
    %p166 = pnand %p164, %p165
    %p167 = pneg %p166
    // Predicated region
    $region29: #{conv_upsample_forward.1} parent=5 // pred_check
      _
    $region30: #{conv_upsample_forward.1} parent=5 // pred_check_branch
      %169 = sbr.rel (%p166) target = $region32
    $region31: #{conv_upsample_forward.1} parent=5 // pred_region
      %s170 = ssub.s32 %s11, 1
      %p171 = scmp.lt.s32.totalorder %s16, 1
      %s172 = scalar_select %p171, %s16, 1
      %s173 = smul.addr %s172, 2
      %s174 = smul.addr %s173, 4
      %s175 = scalar_lea.vmem %s0, %s174
      %p176 = pneg %p37
      %p177 = pneg %p34
      %p178 = pneg %p58
      %p179 = pneg %p55
      %p180 = pneg %p79
      %p181 = pneg %p76
      %p182 = pneg %p105
      %p183 = pneg %p102
      %p184 = scmp.lt.s32.totalorder %s16, 1
      %s185 = scalar_select %p184, %s16, 1
      %s186 = smul.addr %s185, 8
      %s187 = smul.addr %s186, 8
      %s188 = scalar_lea.vmem %s3, %s187
      %p189 = pneg %p131
      %p190 = pneg %p128
      %p191 = scmp.lt.s32.totalorder %s16, 1
      %s192 = scalar_select %p191, %s16, 1
      %s193 = smul.addr %s192, 2
      %s194 = smul.addr %s193, 2
      %s195 = scalar_lea.vmem %s4, %s194
      %p196 = scmp.lt.s32.totalorder %s16, 1
      %s197 = scalar_select %p196, %s16, 1
      %s198 = smul.addr %s197, 2
      %s199 = smul.addr %s198, 4
      %s200 = scalar_lea.vmem %s0, %s199
      %p201 = scmp.lt.s32.totalorder %s16, 1
      %s202 = scalar_select %p201, %s16, 1
      %s203 = smul.addr %s202, 8
      %s204 = smul.addr %s203, 8
      %s205 = scalar_lea.vmem %s3, %s204
      %p206 = scmp.lt.s32.totalorder %s16, 1
      %s207 = scalar_select %p206, %s16, 1
      %s208 = smul.addr %s207, 2
      %s209 = smul.addr %s208, 2
      %s210 = scalar_lea.vmem %s4, %s209
      %v212 = vld [vmem:[%s200] sm:$0xf]
      %v213 = vld [vmem:[%s200 + $0x4] sm:$0xf]
      %v214 = vld [vmem:[%s1] sm:$0xf]
      %v215 = vld [vmem:[%s1 + $0x4] sm:$0xf]
      %v216 = vld [vmem:[%s1 + $0x8] sm:$0xf]
      %v217 = vld [vmem:[%s1 + $0xc] sm:$0xf]
      %v222 = vunpack.c.l.b16 %v214
      %v223 = vunpack.c.l.b16 %v215
      %v224 = vunpack.c.l.b16 %v216
      %v225 = vunpack.c.l.b16 %v217
      %v226 = vpack.c.b16 %v223, %v222
      %v227 = vpack.c.b16 %v225, %v224
      %v230 = vunpack.c.l.b16 %v212
      %v231 = vunpack.c.l.b16 %v213
      %v232 = vpack.c.b16 %v231, %v230
      %vm234 = vcmask 130048
      %v236 = vsel %vm234, %v226, 0
      %v239 = vsel %vm234, %v227, 0
      %241 = vmatprep.subr.bf16.mxu0 0
      %242 = vmatpush1.bf16.msra.mxu0 %v232
      %243 = vmatprep.subr.bf16.mxu0 0
      %244 = vmatpush1.bf16.msra.mxu0 0
      %245 = vmatprep.subr.bf16.mxu0 0
      %246 = vmatpush1.bf16.msra.mxu0 0
      %247 = vmatprep.subr.bf16.mxu0 0
      %248 = vmatpush1.bf16.msra.mxu0 0
      %249 = vmatprep.subr.bf16.mxu0 0
      %250 = vmatpush1.bf16.msra.mxu0 0
      %251 = vmatprep.subr.bf16.mxu0 0
      %252 = vmatpush1.bf16.msra.mxu0 0
      %253 = vmatprep.subr.bf16.mxu0 0
      %254 = vmatpush1.bf16.msra.mxu0 0
      %255 = vmatprep.subr.bf16.mxu0 0
      %256 = vmatpush1.bf16.msra.mxu0 0
      %257 = vmatprep.subr.bf16.mxu0 0
      %258 = vmatpush1.bf16.msra.mxu0 0
      %259 = vmatprep.subr.bf16.mxu0 0
      %260 = vmatpush1.bf16.msra.mxu0 0
      %261 = vmatprep.subr.bf16.mxu0 0
      %262 = vmatpush1.bf16.msra.mxu0 0
      %263 = vmatprep.subr.bf16.mxu0 0
      %264 = vmatpush1.bf16.msra.mxu0 0
      %265 = vmatprep.subr.bf16.mxu0 0
      %266 = vmatpush1.bf16.msra.mxu0 0
      %267 = vmatprep.subr.bf16.mxu0 0
      %268 = vmatpush1.bf16.msra.mxu0 0
      %269 = vmatprep.subr.bf16.mxu0 0
      %270 = vmatpush1.bf16.msra.mxu0 0
      %271 = vmatprep.subr.bf16.mxu0 0
      %272 = vmatpush1.bf16.msra.mxu0 0
      %273 = vmatprep.mubr.bf16.mxu0 0
      %274 = vmatmul.mubr.bf16.gmra.mrb[0].mxu0 %v236
      %v275 = vpop.f32.mrb[0].mxu0
      %v276 = vadd.f32 0.0, %v275
      %v277 = vpop.f32.mrb[0].mxu0
      %v278 = vpop.f32.mrb[0].mxu0
      %v279 = vadd.f32 0.0, %v278
      %v280 = vpop.f32.mrb[0].mxu0
      %281 = vmatprep.mubr.bf16.mxu0 0
      %282 = vmatmul.mubr.bf16.gmra.mrb[0].mxu0 %v239
      %v283 = vpop.f32.mrb[0].mxu0
      %v284 = vadd.f32 0.0, %v283
      %v285 = vpop.f32.mrb[0].mxu0
      %v286 = vpop.f32.mrb[0].mxu0
      %v287 = vadd.f32 0.0, %v286
      %v288 = vpop.f32.mrb[0].mxu0
      %289 = vdwg.mxu0
      %v290 = vpack.c.bf16 %v279, %v276
      %v291 = vpack.c.bf16 %v287, %v284
      %vm292 = vcmask 523264
      %293 = vst.msk [vmem:[#allocation2] sm:$0xff] %vm292, %v290
      %294 = vst.msk [vmem:[#allocation2 + $0x10] sm:$0xff] %vm292, %v291
      %s295 = scalar_lea.vmem %s1, 16
      %v296 = vld [vmem:[%s295] sm:$0xf]
      %v297 = vld [vmem:[%s295 + $0x4] sm:$0xf]
      %v298 = vld [vmem:[%s295 + $0x8] sm:$0xf]
      %v299 = vld [vmem:[%s295 + $0xc] sm:$0xf]
      %v304 = vunpack.c.l.b16 %v296
      %v305 = vunpack.c.l.b16 %v297
      %v306 = vunpack.c.l.b16 %v298
      %v307 = vunpack.c.l.b16 %v299
      %v308 = vpack.c.b16 %v305, %v304
      %v309 = vpack.c.b16 %v307, %v306
      %v311 = vsel %vm234, %v308, 0
      %v314 = vsel %vm234, %v309, 0
      %316 = vmatprep.subr.bf16.mxu0 0
      %317 = vmatpush1.bf16.msra.mxu0 %v232
      %318 = vmatprep.subr.bf16.mxu0 0
      %319 = vmatpush1.bf16.msra.mxu0 0
      %320 = vmatprep.subr.bf16.mxu0 0
      %321 = vmatpush1.bf16.msra.mxu0 0
      %322 = vmatprep.subr.bf16.mxu0 0
      %323 = vmatpush1.bf16.msra.mxu0 0
      %324 = vmatprep.subr.bf16.mxu0 0
      %325 = vmatpush1.bf16.msra.mxu0 0
      %326 = vmatprep.subr.bf16.mxu0 0
      %327 = vmatpush1.bf16.msra.mxu0 0
      %328 = vmatprep.subr.bf16.mxu0 0
      %329 = vmatpush1.bf16.msra.mxu0 0
      %330 = vmatprep.subr.bf16.mxu0 0
      %331 = vmatpush1.bf16.msra.mxu0 0
      %332 = vmatprep.subr.bf16.mxu0 0
      %333 = vmatpush1.bf16.msra.mxu0 0
      %334 = vmatprep.subr.bf16.mxu0 0
      %335 = vmatpush1.bf16.msra.mxu0 0
      %336 = vmatprep.subr.bf16.mxu0 0
      %337 = vmatpush1.bf16.msra.mxu0 0
      %338 = vmatprep.subr.bf16.mxu0 0
      %339 = vmatpush1.bf16.msra.mxu0 0
      %340 = vmatprep.subr.bf16.mxu0 0
      %341 = vmatpush1.bf16.msra.mxu0 0
      %342 = vmatprep.subr.bf16.mxu0 0
      %343 = vmatpush1.bf16.msra.mxu0 0
      %344 = vmatprep.subr.bf16.mxu0 0
      %345 = vmatpush1.bf16.msra.mxu0 0
      %346 = vmatprep.subr.bf16.mxu0 0
      %347 = vmatpush1.bf16.msra.mxu0 0
      %348 = vmatprep.mubr.bf16.mxu0 0
      %349 = vmatmul.mubr.bf16.gmra.mrb[0].mxu0 %v311
      %v350 = vpop.f32.mrb[0].mxu0
      %v351 = vadd.f32 0.0, %v350
      %v352 = vpop.f32.mrb[0].mxu0
      %v353 = vpop.f32.mrb[0].mxu0
      %v354 = vadd.f32 0.0, %v353
      %v355 = vpop.f32.mrb[0].mxu0
      %356 = vmatprep.mubr.bf16.mxu0 0
      %357 = vmatmul.mubr.bf16.gmra.mrb[0].mxu0 %v314
      %v358 = vpop.f32.mrb[0].mxu0
      %v359 = vadd.f32 0.0, %v358
      %v360 = vpop.f32.mrb[0].mxu0
      %v361 = vpop.f32.mrb[0].mxu0
      %v362 = vadd.f32 0.0, %v361
      %v363 = vpop.f32.mrb[0].mxu0
      %364 = vdwg.mxu0
      %v365 = vpack.c.bf16 %v354, %v351
      %v366 = vpack.c.bf16 %v362, %v359
      %369 = vrot.lane.b32.xlu0 %v365, 64
      %v370 = vpop.permute.xlu0 %369
      %371 = vrot.lane.b32.xlu0 %v366, 64
      %v372 = vpop.permute.xlu0 %371
      %vm375 = vcmask 1048064
      %376 = vst.msk [vmem:[#allocation2] sm:$0xff] %vm375, %v370
      %377 = vst.msk [vmem:[#allocation2 + $0x10] sm:$0xff] %vm375, %v372
      %s378 = scalar_lea.vmem %s1, 32
      %v379 = vld [vmem:[%s378] sm:$0xf]
      %v380 = vld [vmem:[%s378 + $0x4] sm:$0xf]
      %v381 = vld [vmem:[%s378 + $0x8] sm:$0xf]
      %v382 = vld [vmem:[%s378 + $0xc] sm:$0xf]
      %v387 = vunpack.c.l.b16 %v379
      %v388 = vunpack.c.l.b16 %v380
      %v389 = vunpack.c.l.b16 %v381
      %v390 = vunpack.c.l.b16 %v382
      %v391 = vpack.c.b16 %v388, %v387
      %v392 = vpack.c.b16 %v390, %v389
      %v394 = vsel %vm234, %v391, 0
      %v397 = vsel %vm234, %v392, 0
      %399 = vmatprep.subr.bf16.mxu0 0
      %400 = vmatpush1.bf16.msra.mxu0 %v232
      %401 = vmatprep.subr.bf16.mxu0 0
      %402 = vmatpush1.bf16.msra.mxu0 0
      %403 = vmatprep.subr.bf16.mxu0 0
      %404 = vmatpush1.bf16.msra.mxu0 0
      %405 = vmatprep.subr.bf16.mxu0 0
      %406 = vmatpush1.bf16.msra.mxu0 0
      %407 = vmatprep.subr.bf16.mxu0 0
      %408 = vmatpush1.bf16.msra.mxu0 0
      %409 = vmatprep.subr.bf16.mxu0 0
      %410 = vmatpush1.bf16.msra.mxu0 0
      %411 = vmatprep.subr.bf16.mxu0 0
      %412 = vmatpush1.bf16.msra.mxu0 0
      %413 = vmatprep.subr.bf16.mxu0 0
      %414 = vmatpush1.bf16.msra.mxu0 0
      %415 = vmatprep.subr.bf16.mxu0 0
      %416 = vmatpush1.bf16.msra.mxu0 0
      %417 = vmatprep.subr.bf16.mxu0 0
      %418 = vmatpush1.bf16.msra.mxu0 0
      %419 = vmatprep.subr.bf16.mxu0 0
      %420 = vmatpush1.bf16.msra.mxu0 0
      %421 = vmatprep.subr.bf16.mxu0 0
      %422 = vmatpush1.bf16.msra.mxu0 0
      %423 = vmatprep.subr.bf16.mxu0 0
      %424 = vmatpush1.bf16.msra.mxu0 0
      %425 = vmatprep.subr.bf16.mxu0 0
      %426 = vmatpush1.bf16.msra.mxu0 0
      %427 = vmatprep.subr.bf16.mxu0 0
      %428 = vmatpush1.bf16.msra.mxu0 0
      %429 = vmatprep.subr.bf16.mxu0 0
      %430 = vmatpush1.bf16.msra.mxu0 0
      %431 = vmatprep.mubr.bf16.mxu0 0
      %432 = vmatmul.mubr.bf16.gmra.mrb[0].mxu0 %v394
      %v433 = vpop.f32.mrb[0].mxu0
      %v434 = vadd.f32 0.0, %v433
      %v435 = vpop.f32.mrb[0].mxu0
      %v436 = vpop.f32.mrb[0].mxu0
      %v437 = vadd.f32 0.0, %v436
      %v438 = vpop.f32.mrb[0].mxu0
      %439 = vmatprep.mubr.bf16.mxu0 0
      %440 = vmatmul.mubr.bf16.gmra.mrb[0].mxu0 %v397
      %v441 = vpop.f32.mrb[0].mxu0
      %v442 = vadd.f32 0.0, %v441
      %v443 = vpop.f32.mrb[0].mxu0
      %v444 = vpop.f32.mrb[0].mxu0
      %v445 = vadd.f32 0.0, %v444
      %v446 = vpop.f32.mrb[0].mxu0
      %447 = vdwg.mxu0
      %v448 = vpack.c.bf16 %v437, %v434
      %v449 = vpack.c.bf16 %v445, %v442
      %450 = vst.msk [vmem:[#allocation2 + $0x8] sm:$0xff] %vm292, %v448
      %451 = vst.msk [vmem:[#allocation2 + $0x18] sm:$0xff] %vm292, %v449
      %s452 = scalar_lea.vmem %s1, 48
      %v453 = vld [vmem:[%s452] sm:$0xf]
      %v454 = vld [vmem:[%s452 + $0x4] sm:$0xf]
      %v455 = vld [vmem:[%s452 + $0x8] sm:$0xf]
      %v456 = vld [vmem:[%s452 + $0xc] sm:$0xf]
      %v461 = vunpack.c.l.b16 %v453
      %v462 = vunpack.c.l.b16 %v454
      %v463 = vunpack.c.l.b16 %v455
      %v464 = vunpack.c.l.b16 %v456
      %v465 = vpack.c.b16 %v462, %v461
      %v466 = vpack.c.b16 %v464, %v463
      %v468 = vsel %vm234, %v465, 0
      %v471 = vsel %vm234, %v466, 0
      %473 = vmatprep.subr.bf16.mxu0 0
      %474 = vmatpush1.bf16.msra.mxu0 %v232
      %475 = vmatprep.subr.bf16.mxu0 0
      %476 = vmatpush1.bf16.msra.mxu0 0
      %477 = vmatprep.subr.bf16.mxu0 0
      %478 = vmatpush1.bf16.msra.mxu0 0
      %479 = vmatprep.subr.bf16.mxu0 0
      %480 = vmatpush1.bf16.msra.mxu0 0
      %481 = vmatprep.subr.bf16.mxu0 0
      %482 = vmatpush1.bf16.msra.mxu0 0
      %483 = vmatprep.subr.bf16.mxu0 0
      %484 = vmatpush1.bf16.msra.mxu0 0
      %485 = vmatprep.subr.bf16.mxu0 0
      %486 = vmatpush1.bf16.msra.mxu0 0
      %487 = vmatprep.subr.bf16.mxu0 0
      %488 = vmatpush1.bf16.msra.mxu0 0
      %489 = vmatprep.subr.bf16.mxu0 0
      %490 = vmatpush1.bf16.msra.mxu0 0
      %491 = vmatprep.subr.bf16.mxu0 0
      %492 = vmatpush1.bf16.msra.mxu0 0
      %493 = vmatprep.subr.bf16.mxu0 0
      %494 = vmatpush1.bf16.msra.mxu0 0
      %495 = vmatprep.subr.bf16.mxu0 0
      %496 = vmatpush1.bf16.msra.mxu0 0
      %497 = vmatprep.subr.bf16.mxu0 0
      %498 = vmatpush1.bf16.msra.mxu0 0
      %499 = vmatprep.subr.bf16.mxu0 0
      %500 = vmatpush1.bf16.msra.mxu0 0
      %501 = vmatprep.subr.bf16.mxu0 0
      %502 = vmatpush1.bf16.msra.mxu0 0
      %503 = vmatprep.subr.bf16.mxu0 0
      %504 = vmatpush1.bf16.msra.mxu0 0
      %505 = vmatprep.mubr.bf16.mxu0 0
      %506 = vmatmul.mubr.bf16.gmra.mrb[0].mxu0 %v468
      %v507 = vpop.f32.mrb[0].mxu0
      %v508 = vadd.f32 0.0, %v507
      %v509 = vpop.f32.mrb[0].mxu0
      %v510 = vpop.f32.mrb[0].mxu0
      %v511 = vadd.f32 0.0, %v510
      %v512 = vpop.f32.mrb[0].mxu0
      %513 = vmatprep.mubr.bf16.mxu0 0
      %514 = vmatmul.mubr.bf16.gmra.mrb[0].mxu0 %v471
      %v515 = vpop.f32.mrb[0].mxu0
      %v516 = vadd.f32 0.0, %v515
      %v517 = vpop.f32.mrb[0].mxu0
      %v518 = vpop.f32.mrb[0].mxu0
      %v519 = vadd.f32 0.0, %v518
      %v520 = vpop.f32.mrb[0].mxu0
      %521 = vdwg.mxu0
      %v522 = vpack.c.bf16 %v511, %v508
      %v523 = vpack.c.bf16 %v519, %v516
      %526 = vrot.lane.b32.xlu0 %v522, 64
      %v527 = vpop.permute.xlu0 %526
      %528 = vrot.lane.b32.xlu0 %v523, 64
      %v529 = vpop.permute.xlu0 %528
      %532 = vst.msk [vmem:[#allocation2 + $0x8] sm:$0xff] %vm375, %v527
      %533 = vst.msk [vmem:[#allocation2 + $0x18] sm:$0xff] %vm375, %v529
      %v534 = vld [vmem:[#allocation2] sm:$0xff]
      %v535 = vld [vmem:[#allocation2 + $0x8] sm:$0xff]
      %v536 = vld [vmem:[#allocation2 + $0x10] sm:$0xff]
      %v537 = vld [vmem:[#allocation2 + $0x18] sm:$0xff]
      %v538 = vld [vmem:[%s2] sm:$0xff]
      %v539 = vld [vmem:[%s2 + $0x8] sm:$0xff]
      %v540 = vld [vmem:[%s2 + $0x10] sm:$0xff]
      %v541 = vld [vmem:[%s2 + $0x18] sm:$0xff]
      %v542 = vld [vmem:[%s2 + $0x20] sm:$0xff]
      %v543 = vld [vmem:[%s2 + $0x28] sm:$0xff]
      %v544 = vld [vmem:[%s2 + $0x30] sm:$0xff]
      %v545 = vld [vmem:[%s2 + $0x38] sm:$0xff]
      %v546 = vld [vmem:[%s2 + $0x40] sm:$0xff]
      %v547 = vld [vmem:[%s2 + $0x48] sm:$0xff]
      %v548 = vld [vmem:[%s2 + $0x50] sm:$0xff]
      %v549 = vld [vmem:[%s2 + $0x58] sm:$0xff]
      %v550 = vld [vmem:[%s2 + $0x60] sm:$0xff]
      %v551 = vld [vmem:[%s2 + $0x68] sm:$0xff]
      %v552 = vld [vmem:[%s2 + $0x70] sm:$0xff]
      %v553 = vld [vmem:[%s2 + $0x78] sm:$0xff]
      %v554 = vld [vmem:[%s2 + $0x80] sm:$0xff]
      %v555 = vld [vmem:[%s2 + $0x88] sm:$0xff]
      %v556 = vld [vmem:[%s2 + $0x90] sm:$0xff]
      %v557 = vld [vmem:[%s2 + $0x98] sm:$0xff]
      %v558 = vld [vmem:[%s2 + $0xa0] sm:$0xff]
      %v559 = vld [vmem:[%s2 + $0xa8] sm:$0xff]
      %v560 = vld [vmem:[%s2 + $0xb0] sm:$0xff]
      %v561 = vld [vmem:[%s2 + $0xb8] sm:$0xff]
      %v562 = vld [vmem:[%s2 + $0xc0] sm:$0xff]
      %v563 = vld [vmem:[%s2 + $0xc8] sm:$0xff]
      %v564 = vld [vmem:[%s2 + $0xd0] sm:$0xff]
      %v565 = vld [vmem:[%s2 + $0xd8] sm:$0xff]
      %v566 = vld [vmem:[%s2 + $0xe0] sm:$0xff]
      %v567 = vld [vmem:[%s2 + $0xe8] sm:$0xff]
      %v568 = vld [vmem:[%s2 + $0xf0] sm:$0xff]
      %v569 = vld [vmem:[%s2 + $0xf8] sm:$0xff]
      %v602 = vunpack.c.l.b16 %v538
      %v603 = vunpack.c.h.b16 %v538
      %v604 = vunpack.c.l.b16 %v539
      %v605 = vunpack.c.h.b16 %v539
      %v606 = vunpack.c.l.b16 %v540
      %v607 = vunpack.c.h.b16 %v540
      %v608 = vunpack.c.l.b16 %v541
      %v609 = vunpack.c.h.b16 %v541
      %v610 = vunpack.c.l.b16 %v542
      %v611 = vunpack.c.h.b16 %v542
      %v612 = vunpack.c.l.b16 %v543
      %v613 = vunpack.c.h.b16 %v543
      %v614 = vunpack.c.l.b16 %v544
      %v615 = vunpack.c.h.b16 %v544
      %v616 = vunpack.c.l.b16 %v545
      %v617 = vunpack.c.h.b16 %v545
      %v618 = vunpack.c.l.b16 %v546
      %v619 = vunpack.c.h.b16 %v546
      %v620 = vunpack.c.l.b16 %v547
      %v621 = vunpack.c.h.b16 %v547
      %v622 = vunpack.c.l.b16 %v548
      %v623 = vunpack.c.h.b16 %v548
      %v624 = vunpack.c.l.b16 %v549
      %v625 = vunpack.c.h.b16 %v549
      %v626 = vunpack.c.l.b16 %v550
      %v627 = vunpack.c.h.b16 %v550
      %v628 = vunpack.c.l.b16 %v551
      %v629 = vunpack.c.h.b16 %v551
      %v630 = vunpack.c.l.b16 %v552
      %v631 = vunpack.c.h.b16 %v552
      %v632 = vunpack.c.l.b16 %v553
      %v633 = vunpack.c.h.b16 %v553
      %v634 = vunpack.c.l.b16 %v554
      %v635 = vunpack.c.h.b16 %v554
      %v636 = vunpack.c.l.b16 %v555
      %v637 = vunpack.c.h.b16 %v555
      %v638 = vunpack.c.l.b16 %v556
      %v639 = vunpack.c.h.b16 %v556
      %v640 = vunpack.c.l.b16 %v557
      %v641 = vunpack.c.h.b16 %v557
      %v642 = vunpack.c.l.b16 %v558
      %v643 = vunpack.c.h.b16 %v558
      %v644 = vunpack.c.l.b16 %v559
      %v645 = vunpack.c.h.b16 %v559
      %v646 = vunpack.c.l.b16 %v560
      %v647 = vunpack.c.h.b16 %v560
      %v648 = vunpack.c.l.b16 %v561
      %v649 = vunpack.c.h.b16 %v561
      %v650 = vunpack.c.l.b16 %v562
      %v651 = vunpack.c.h.b16 %v562
      %v652 = vunpack.c.l.b16 %v563
      %v653 = vunpack.c.h.b16 %v563
      %v654 = vunpack.c.l.b16 %v564
      %v655 = vunpack.c.h.b16 %v564
      %v656 = vunpack.c.l.b16 %v565
      %v657 = vunpack.c.h.b16 %v565
      %v658 = vunpack.c.l.b16 %v566
      %v659 = vunpack.c.h.b16 %v566
      %v660 = vunpack.c.l.b16 %v567
      %v661 = vunpack.c.h.b16 %v567
      %v662 = vunpack.c.l.b16 %v568
      %v663 = vunpack.c.h.b16 %v568
      %v664 = vunpack.c.l.b16 %v569
      %v665 = vunpack.c.h.b16 %v569
      %v666 = vpack.c.b16 %v604, %v602
      %v667 = vpack.c.b16 %v605, %v603
      %v668 = vpack.c.b16 %v608, %v606
      %v669 = vpack.c.b16 %v609, %v607
      %v670 = vpack.c.b16 %v612, %v610
      %v671 = vpack.c.b16 %v613, %v611
      %v672 = vpack.c.b16 %v616, %v614
      %v673 = vpack.c.b16 %v617, %v615
      %v674 = vpack.c.b16 %v620, %v618
      %v675 = vpack.c.b16 %v621, %v619
      %v676 = vpack.c.b16 %v624, %v622
      %v677 = vpack.c.b16 %v625, %v623
      %v678 = vpack.c.b16 %v628, %v626
      %v679 = vpack.c.b16 %v629, %v627
      %v680 = vpack.c.b16 %v632, %v630
      %v681 = vpack.c.b16 %v633, %v631
      %v682 = vpack.c.b16 %v636, %v634
      %v683 = vpack.c.b16 %v637, %v635
      %v684 = vpack.c.b16 %v640, %v638
      %v685 = vpack.c.b16 %v641, %v639
      %v686 = vpack.c.b16 %v644, %v642
      %v687 = vpack.c.b16 %v645, %v643
      %v688 = vpack.c.b16 %v648, %v646
      %v689 = vpack.c.b16 %v649, %v647
      %v690 = vpack.c.b16 %v652, %v650
      %v691 = vpack.c.b16 %v653, %v651
      %v692 = vpack.c.b16 %v656, %v654
      %v693 = vpack.c.b16 %v657, %v655
      %v694 = vpack.c.b16 %v660, %v658
      %v695 = vpack.c.b16 %v661, %v659
      %v696 = vpack.c.b16 %v664, %v662
      %v697 = vpack.c.b16 %v665, %v663
      %730 = vmatprep.subr.bf16.mxu0 %v667
      %731 = vmatpush1.bf16.msra.mxu0 %v666
      %732 = vmatprep.subr.bf16.mxu0 %v669
      %733 = vmatpush1.bf16.msra.mxu0 %v668
      %734 = vmatprep.subr.bf16.mxu0 %v671
      %735 = vmatpush1.bf16.msra.mxu0 %v670
      %736 = vmatprep.subr.bf16.mxu0 %v673
      %737 = vmatpush1.bf16.msra.mxu0 %v672
      %738 = vmatprep.subr.bf16.mxu0 %v675
      %739 = vmatpush1.bf16.msra.mxu0 %v674
      %740 = vmatprep.subr.bf16.mxu0 %v677
      %741 = vmatpush1.bf16.msra.mxu0 %v676
      %742 = vmatprep.subr.bf16.mxu0 %v679
      %743 = vmatpush1.bf16.msra.mxu0 %v678
      %744 = vmatprep.subr.bf16.mxu0 %v681
      %745 = vmatpush1.bf16.msra.mxu0 %v680
      %746 = vmatprep.subr.bf16.mxu0 %v683
      %747 = vmatpush1.bf16.msra.mxu0 %v682
      %748 = vmatprep.subr.bf16.mxu0 %v685
      %749 = vmatpush1.bf16.msra.mxu0 %v684
      %750 = vmatprep.subr.bf16.mxu0 %v687
      %751 = vmatpush1.bf16.msra.mxu0 %v686
      %752 = vmatprep.subr.bf16.mxu0 %v689
      %753 = vmatpush1.bf16.msra.mxu0 %v688
      %754 = vmatprep.subr.bf16.mxu0 %v691
      %755 = vmatpush1.bf16.msra.mxu0 %v690
      %756 = vmatprep.subr.bf16.mxu0 %v693
      %757 = vmatpush1.bf16.msra.mxu0 %v692
      %758 = vmatprep.subr.bf16.mxu0 %v695
      %759 = vmatpush1.bf16.msra.mxu0 %v694
      %760 = vmatprep.subr.bf16.mxu0 %v697
      %761 = vmatpush1.bf16.msra.mxu0 %v696
      %762 = vmatprep.mubr.bf16.mxu0 %v535
      %763 = vmatmul.mubr.bf16.gmra.mrb[0].mxu0 %v534
      %v764 = vpop.f32.mrb[0].mxu0
      %v765 = vadd.f32 0.0, %v764
      %v766 = vpop.f32.mrb[0].mxu0
      %v767 = vadd.f32 0.0, %v766
      %v768 = vpop.f32.mrb[0].mxu0
      %v769 = vadd.f32 0.0, %v768
      %v770 = vpop.f32.mrb[0].mxu0
      %v771 = vadd.f32 0.0, %v770
      %772 = vmatprep.mubr.bf16.mxu0 %v537
      %773 = vmatmul.mubr.bf16.gmra.mrb[0].mxu0 %v536
      %v774 = vpop.f32.mrb[0].mxu0
      %v775 = vadd.f32 0.0, %v774
      %v776 = vpop.f32.mrb[0].mxu0
      %v777 = vadd.f32 0.0, %v776
      %v778 = vpop.f32.mrb[0].mxu0
      %v779 = vadd.f32 0.0, %v778
      %v780 = vpop.f32.mrb[0].mxu0
      %v781 = vadd.f32 0.0, %v780
      %782 = vdwg.mxu0
      %783 = vst [vmem:[%s205] sm:$0xff] %v765
      %784 = vst [vmem:[%s205 + $0x8] sm:$0xff] %v767
      %785 = vst [vmem:[%s205 + $0x10] sm:$0xff] %v769
      %786 = vst [vmem:[%s205 + $0x18] sm:$0xff] %v771
      %787 = vst [vmem:[%s205 + $0x20] sm:$0xff] %v775
      %788 = vst [vmem:[%s205 + $0x28] sm:$0xff] %v777
      %789 = vst [vmem:[%s205 + $0x30] sm:$0xff] %v779
      %790 = vst [vmem:[%s205 + $0x38] sm:$0xff] %v781
      %v791 = vadd.f32 %v765, %v769
      %v792 = vadd.f32 %v791, %v775
      %v793 = vadd.f32 %v792, %v779
      %v794 = vrot.slane %v793, 4
      %v795 = vadd.f32 %v793, %v794
      %v796 = vrot.slane %v795, 2
      %v797 = vadd.f32 %v795, %v796
      %v798 = vrot.slane %v797, 1
      %v799 = vadd.f32 %v797, %v798
      %v800 = vadd.f32 %v767, %v771
      %v801 = vadd.f32 %v800, %v777
      %v802 = vadd.f32 %v801, %v781
      %v803 = vrot.slane %v802, 4
      %v804 = vadd.f32 %v802, %v803
      %v805 = vrot.slane %v804, 2
      %v806 = vadd.f32 %v804, %v805
      %v807 = vrot.slane %v806, 1
      %v808 = vadd.f32 %v806, %v807
      %v809 = vmul.f32 %v765, %v765
      %v810 = vmul.f32 %v767, %v767
      %v811 = vmul.f32 %v769, %v769
      %v812 = vmul.f32 %v771, %v771
      %v813 = vmul.f32 %v775, %v775
      %v814 = vmul.f32 %v777, %v777
      %v815 = vmul.f32 %v779, %v779
      %v816 = vmul.f32 %v781, %v781
      %v817 = vadd.f32 %v809, %v811
      %v818 = vadd.f32 %v817, %v813
      %v819 = vadd.f32 %v818, %v815
      %v820 = vrot.slane %v819, 4
      %v821 = vadd.f32 %v819, %v820
      %v822 = vrot.slane %v821, 2
      %v823 = vadd.f32 %v821, %v822
      %v824 = vrot.slane %v823, 1
      %v825 = vadd.f32 %v823, %v824
      %v826 = vadd.f32 %v810, %v812
      %v827 = vadd.f32 %v826, %v814
      %v828 = vadd.f32 %v827, %v816
      %v829 = vrot.slane %v828, 4
      %v830 = vadd.f32 %v828, %v829
      %v831 = vrot.slane %v830, 2
      %v832 = vadd.f32 %v830, %v831
      %v833 = vrot.slane %v832, 1
      %v834 = vadd.f32 %v832, %v833
      %vm835 = vcmask 1040384
      %v836 = vsel %vm835, %v799, %v825
      %v837 = vsel %vm835, %v808, %v834
      %v840 = vcombine.low %v836, %v837
      %v842 = vunpack.c.l.s4 1983009808
      %v843 = vunpack.c.0.s8 %v842
      %v844 = vlaneseq
      %v845 = vshrl.u32 %v844, 7
      %v846 = vsub.s32 %v843, %v845
      %v847 = vrot.slane %v840, %v846
      %849 = vst [vmem:[%s210] sm:$0xf] %v847
      %p850 = scmp.lt.s32.totalorder %s16, 1
      %s851 = scalar_select %p850, %s16, 1
      %s852 = smul.addr %s851, 8
      %s853 = smul.addr %s852, 8
      %s854 = scalar_lea.vmem %s3, %s853
      %p855 = scmp.lt.s32.totalorder %s16, 1
      %s856 = scalar_select %p855, %s16, 1
      %s857 = smul.addr %s856, 2
      %s858 = smul.addr %s857, 2
      %s859 = scalar_lea.vmem %s4, %s858
      // Predicated region
      $region33: #{conv_upsample_forward.1} parent=31 // pred_check
        %p860 = pneg %p102
      $region34: #{conv_upsample_forward.1} parent=31 // pred_check_branch
        %862 = sbr.rel (%p860) target = $region36
      $region35: #{conv_upsample_forward.1} parent=31 // pred_region
        _
      $region36: #{conv_upsample_forward.1} parent=31 // pred_fallthru
        _
      // Predicated region
      $region37: #{conv_upsample_forward.1} parent=31 // pred_check
        %p863 = pneg %p128
      $region38: #{conv_upsample_forward.1} parent=31 // pred_check_branch
        %865 = sbr.rel (%p863) target = $region40
      $region39: #{conv_upsample_forward.1} parent=31 // pred_region
        _
      $region40: #{conv_upsample_forward.1} parent=31 // pred_fallthru
        _
    $region32: #{conv_upsample_forward.1} parent=5 // pred_fallthru
      _
    %p866 = scmp.le.s32.totalorder 2, %s11
    // Predicated region
    $region41: #{conv_upsample_forward.1} parent=5 // pred_check
      %p867 = pneg %p866
    $region42: #{conv_upsample_forward.1} parent=5 // pred_check_branch
      %869 = sbr.rel (%p867) target = $region44
    $region43: #{conv_upsample_forward.1} parent=5 // pred_region
      %s870 = ssub.s32 %s11, 2
      // Predicated region
      $region45: #{conv_upsample_forward.1} parent=43 // pred_check
        %p871 = pneg %p108
      $region46: #{conv_upsample_forward.1} parent=43 // pred_check_branch
        %873 = sbr.rel (%p871) target = $region48
      $region47: #{conv_upsample_forward.1} parent=43 // pred_region
        %p874 = scmp.lt.s32.totalorder %s17, 1
        %s875 = scalar_select %p874, %s17, 1
        %s876 = smul.addr %s875, 8
        %s877 = smul.addr %s876, 8
        %s878 = scalar_lea.vmem %s3, %s877
      $region48: #{conv_upsample_forward.1} parent=43 // pred_fallthru
        _
      // Predicated region
      $region49: #{conv_upsample_forward.1} parent=43 // pred_check
        %p879 = pneg %p134
      $region50: #{conv_upsample_forward.1} parent=43 // pred_check_branch
        %881 = sbr.rel (%p879) target = $region52
      $region51: #{conv_upsample_forward.1} parent=43 // pred_region
        %p882 = scmp.lt.s32.totalorder %s17, 1
        %s883 = scalar_select %p882, %s17, 1
        %s884 = smul.addr %s883, 2
        %s885 = smul.addr %s884, 2
        %s886 = scalar_lea.vmem %s4, %s885
      $region52: #{conv_upsample_forward.1} parent=43 // pred_fallthru
        _
    $region44: #{conv_upsample_forward.1} parent=5 // pred_fallthru
      _
  $region6: #{conv_upsample_forward.1} parent=0 // loop_footer
    %s15 = sadd.s32 1, %s11
  $region7: #{conv_upsample_forward.1} parent=0 // loop_footer_branch
    %10 = sbr.rel target = $region3
  $region8: #{conv_upsample_forward.1} parent=0 // loop_exit
    _

</llo_original>
